<compile_context>
chip_gen: v6e
topology: v6e:2x2x1
jax: 0.10.0
libtpu: 0.0.40
codegen_flags: <defaults>
</compile_context>

<pallas_src>
import jax
import jax.numpy as jnp
from jax.experimental import pallas as pl
from jax.experimental.pallas import tpu as pltpu

IN_DIM = 10
OUT_DIM = 9
TILE_B_MAX = 2048   # big tiles amortize per-grid-step overhead; VMEM stays tiny

LAYER_DIMS = [(10, 64), (64, 128), (128, 64), (64, 32), (32, 9)]


def _round_up(n, m):
    return ((n + m - 1) // m) * m


def _mlp_logsoftmax_kernel(x_ref,
                           w1_ref, b1_ref,
                           w2_ref, b2_ref,
                           w3_ref, b3_ref,
                           w4_ref, b4_ref,
                           w5_ref, b5_ref,
                           out_ref):
    """Full MLP + log_softmax on one (tile_b, IN_DIM) batch tile.

    MXU inputs are bf16 with f32 accumulation; bias add / ReLU / softmax stay
    in f32 (f32 elementwise + bf16 only at the matmul boundary is the right
    shape on v5e, and fine on v6e/v7x).  Dropout is identity at inference.
    """
    h = x_ref[...].astype(jnp.bfloat16)                       # (tile_b, 10)

    h = jnp.maximum(
        jnp.dot(h, w1_ref[...], preferred_element_type=jnp.float32)
        + b1_ref[...], 0.0).astype(jnp.bfloat16)
    h = jnp.maximum(
        jnp.dot(h, w2_ref[...], preferred_element_type=jnp.float32)
        + b2_ref[...], 0.0).astype(jnp.bfloat16)
    h = jnp.maximum(
        jnp.dot(h, w3_ref[...], preferred_element_type=jnp.float32)
        + b3_ref[...], 0.0).astype(jnp.bfloat16)
    h = jnp.maximum(
        jnp.dot(h, w4_ref[...], preferred_element_type=jnp.float32)
        + b4_ref[...], 0.0).astype(jnp.bfloat16)

    # final layer -> (tile_b, 9) logits in f32 (no padded columns)
    z = jnp.dot(h, w5_ref[...], preferred_element_type=jnp.float32) + b5_ref[...]

    # numerically-stable log_softmax along dim=1
    m = jnp.max(z, axis=1, keepdims=True)
    e = jnp.exp(z - m)
    s = jnp.sum(e, axis=1, keepdims=True)
    out_ref[...] = (z - m) - jnp.log(s)


def pack_params(params):
    """One-time conversion (outside the jitted forward).

    params: list of 5 (W (in,out) f32, b (out,) f32) pairs.
    Returns a flat tuple (W1,b1,...,W5,b5): weights in bf16 (MXU-native),
    biases in f32 as (1, out) rows.  No padding is needed: every parameter
    block uses full-array dims, which are exempt from the (8, 128) rule.
    """
    out = []
    for w, b in params:
        out.append(w.astype(jnp.bfloat16))
        out.append(b.astype(jnp.float32)[None, :])
    return tuple(out)


def _choose_tiling(batch):
    """Balanced batch tiles.

    * n = cdiv(B, TILE_B_MAX) tiles of round_up(B/n, 8) rows avoids the ~2x
      padded-compute waste for batches just above a tile boundary.
    * For B > 16, force >= 2 grid steps so dimension_semantics=("parallel",)
      can shard the batch axis across both v7x TensorCores (neutral on
      single-TC v5e/v6e).
    * For small B a single full-array block is used (no row padding at all).
    """
    n = pl.cdiv(batch, TILE_B_MAX)
    if batch > 16:
        n = max(n, 2)
    if n == 1:
        return batch, 1
    tile_b = _round_up(pl.cdiv(batch, n), 8)
    return tile_b, pl.cdiv(batch, tile_b)


@jax.jit
def tictactoe_forward(x, packed):
    """x: (B, 10) float32. packed: output of pack_params.

    Returns log-probabilities of shape (B, 9), matching
    torch.nn.functional.log_softmax(model(x), dim=1) at inference.
    """
    B = x.shape[0]
    if B == 0:
        return jnp.zeros((0, OUT_DIM), jnp.float32)

    tile_b, n_tiles = _choose_tiling(B)

    # Input is consumed unpadded; bf16 cast happens inside the kernel, so the
    # whole forward is a single pallas_call (no pad / cast / slice XLA ops).
    # The ragged final block (when tile_b * n_tiles > B) is handled by Pallas:
    # out-of-bounds rows read undefined data and their writes are discarded.
    in_specs = [pl.BlockSpec((tile_b, IN_DIM), lambda i: (i, 0))]
    # Weights / biases: full-array blocks with constant index maps -> fetched
    # once and resident in VMEM across all batch grid steps.
    for a in packed:
        in_specs.append(pl.BlockSpec(a.shape, lambda i: (0, 0)))

    return pl.pallas_call(
        _mlp_logsoftmax_kernel,
        out_shape=jax.ShapeDtypeStruct((B, OUT_DIM), jnp.float32),
        grid=(n_tiles,),
        in_specs=in_specs,
        out_specs=pl.BlockSpec((tile_b, OUT_DIM), lambda i: (i, 0)),
        compiler_params=pltpu.CompilerParams(
            dimension_semantics=("parallel",)),
    )(x, *packed)


def init_params(key):
    """Deterministic init matching nn.Linear shapes: W stored as (in, out)."""
    params = []
    for i, (fan_in, fan_out) in enumerate(LAYER_DIMS):
        kw, kb = jax.random.split(jax.random.fold_in(key, i))
        bound = 1.0 / jnp.sqrt(jnp.float32(fan_in))
        w = jax.random.uniform(kw, (fan_in, fan_out), jnp.float32, -bound, bound)
        b = jax.random.uniform(kb, (fan_out,), jnp.float32, -bound, bound)
        params.append((w, b))
    return params


def reference_forward(x, params):
    """Plain-JAX f32 reference for correctness checking."""
    h = x.astype(jnp.float32)
    for i, (w, b) in enumerate(params):
        h = h @ w + b
        if i < len(params) - 1:
            h = jnp.maximum(h, 0.0)
    return jax.nn.log_softmax(h, axis=1)


if __name__ == "__main__":
    key = jax.random.PRNGKey(0)
    params = init_params(key)
    packed = pack_params(params)  # one-time bf16 conversion

    # Input mimics get_move(): [player] + 9 board cells, values in {0,1,2}.
    B = 2
    kx = jax.random.fold_in(key, 1234)
    x = jax.random.randint(kx, (B, IN_DIM), 0, 3).astype(jnp.float32)

    out = jax.block_until_ready(tictactoe_forward(x, packed))
    ref = reference_forward(x, params)
    assert out.shape == (B, OUT_DIM), out.shape
    err = float(jnp.max(jnp.abs(out - ref)))
    assert err < 5e-2, f"max err {err}"  # bf16 matmuls, f32 accumulation

    # Exercise the multi-tile grid path (2 balanced tiles, ragged last block).
    B2 = 260
    kx2 = jax.random.fold_in(key, 5678)
    x2 = jax.random.randint(kx2, (B2, IN_DIM), 0, 3).astype(jnp.float32)
    out2 = jax.block_until_ready(tictactoe_forward(x2, packed))
    ref2 = reference_forward(x2, params)
    assert out2.shape == (B2, OUT_DIM), out2.shape
    err2 = float(jnp.max(jnp.abs(out2 - ref2)))
    assert err2 < 5e-2, f"max err {err2}"

    print("KERNEL_OK")
</pallas_src>

<mosaic_0001>
module attributes {stable_mosaic.version = 11 : i64} {
  func.func @_mlp_logsoftmax_kernel(%arg0: i32, %arg1: memref<2x10xf32, #tpu.memory_space<vmem>>, %arg2: memref<10x64xbf16, #tpu.memory_space<vmem>>, %arg3: memref<1x64xf32, #tpu.memory_space<vmem>>, %arg4: memref<64x128xbf16, #tpu.memory_space<vmem>>, %arg5: memref<1x128xf32, #tpu.memory_space<vmem>>, %arg6: memref<128x64xbf16, #tpu.memory_space<vmem>>, %arg7: memref<1x64xf32, #tpu.memory_space<vmem>>, %arg8: memref<64x32xbf16, #tpu.memory_space<vmem>>, %arg9: memref<1x32xf32, #tpu.memory_space<vmem>>, %arg10: memref<32x9xbf16, #tpu.memory_space<vmem>>, %arg11: memref<1x9xf32, #tpu.memory_space<vmem>>, %arg12: memref<2x9xf32, #tpu.memory_space<vmem>>) attributes {dimension_semantics = [#tpu.dimension_semantics<parallel>], iteration_bounds = array<i64: 1>, scalar_prefetch = 0 : i64, scratch_operands = 0 : i64, tpu.core_type = #tpu.core_type<tc>, window_params = [{transform_indices = @transform_0, window_bounds = array<i64: 2, 10>}, {pipeline_mode = #tpu.pipeline_mode<synchronous>, transform_indices = @transform_1, window_bounds = array<i64: 10, 64>}, {pipeline_mode = #tpu.pipeline_mode<synchronous>, transform_indices = @transform_2, window_bounds = array<i64: 1, 64>}, {pipeline_mode = #tpu.pipeline_mode<synchronous>, transform_indices = @transform_3, window_bounds = array<i64: 64, 128>}, {pipeline_mode = #tpu.pipeline_mode<synchronous>, transform_indices = @transform_4, window_bounds = array<i64: 1, 128>}, {pipeline_mode = #tpu.pipeline_mode<synchronous>, transform_indices = @transform_5, window_bounds = array<i64: 128, 64>}, {pipeline_mode = #tpu.pipeline_mode<synchronous>, transform_indices = @transform_6, window_bounds = array<i64: 1, 64>}, {pipeline_mode = #tpu.pipeline_mode<synchronous>, transform_indices = @transform_7, window_bounds = array<i64: 64, 32>}, {pipeline_mode = #tpu.pipeline_mode<synchronous>, transform_indices = @transform_8, window_bounds = array<i64: 1, 32>}, {pipeline_mode = #tpu.pipeline_mode<synchronous>, transform_indices = @transform_9, window_bounds = array<i64: 32, 9>}, {pipeline_mode = #tpu.pipeline_mode<synchronous>, transform_indices = @transform_10, window_bounds = array<i64: 1, 9>}, {transform_indices = @transform_11, window_bounds = array<i64: 2, 9>}]} {
    %c0 = arith.constant 0 : index
    %c0_0 = arith.constant 0 : index
    %0 = vector.load %arg1[%c0, %c0_0] : memref<2x10xf32, #tpu.memory_space<vmem>>, vector<2x10xf32>
    %1 = arith.truncf %0 : vector<2x10xf32> to vector<2x10xbf16>
    %c0_1 = arith.constant 0 : index
    %c0_2 = arith.constant 0 : index
    %2 = vector.load %arg2[%c0_1, %c0_2] : memref<10x64xbf16, #tpu.memory_space<vmem>>, vector<10x64xbf16>
    %cst = arith.constant dense<0.000000e+00> : vector<2x64xf32>
    %3 = tpu.matmul %1, %2, %cst {dimension_numbers = #tpu.dot_dimension_numbers<[1], [0], [0], [1], [0, 0, 1, 1], [], []>} : vector<2x10xbf16>, vector<10x64xbf16>, vector<2x64xf32> -> vector<2x64xf32>
    %c0_3 = arith.constant 0 : index
    %c0_4 = arith.constant 0 : index
    %4 = vector.load %arg3[%c0_3, %c0_4] : memref<1x64xf32, #tpu.memory_space<vmem>>, vector<1x64xf32>
    %5 = vector.broadcast %4 : vector<1x64xf32> to vector<2x64xf32>
    %6 = arith.addf %3, %5 : vector<2x64xf32>
    %cst_5 = arith.constant 0.000000e+00 : f32
    %7 = vector.broadcast %cst_5 : f32 to vector<2x64xf32>
    %8 = arith.maximumf %6, %7 : vector<2x64xf32>
    %9 = arith.truncf %8 : vector<2x64xf32> to vector<2x64xbf16>
    %c0_6 = arith.constant 0 : index
    %c0_7 = arith.constant 0 : index
    %10 = vector.load %arg4[%c0_6, %c0_7] : memref<64x128xbf16, #tpu.memory_space<vmem>>, vector<64x128xbf16>
    %cst_8 = arith.constant dense<0.000000e+00> : vector<2x128xf32>
    %11 = tpu.matmul %9, %10, %cst_8 {dimension_numbers = #tpu.dot_dimension_numbers<[1], [0], [0], [1], [0, 0, 1, 1], [], []>} : vector<2x64xbf16>, vector<64x128xbf16>, vector<2x128xf32> -> vector<2x128xf32>
    %c0_9 = arith.constant 0 : index
    %c0_10 = arith.constant 0 : index
    %12 = vector.load %arg5[%c0_9, %c0_10] : memref<1x128xf32, #tpu.memory_space<vmem>>, vector<1x128xf32>
    %13 = vector.broadcast %12 : vector<1x128xf32> to vector<2x128xf32>
    %14 = arith.addf %11, %13 : vector<2x128xf32>
    %cst_11 = arith.constant 0.000000e+00 : f32
    %15 = vector.broadcast %cst_11 : f32 to vector<2x128xf32>
    %16 = arith.maximumf %14, %15 : vector<2x128xf32>
    %17 = arith.truncf %16 : vector<2x128xf32> to vector<2x128xbf16>
    %c0_12 = arith.constant 0 : index
    %c0_13 = arith.constant 0 : index
    %18 = vector.load %arg6[%c0_12, %c0_13] : memref<128x64xbf16, #tpu.memory_space<vmem>>, vector<128x64xbf16>
    %cst_14 = arith.constant dense<0.000000e+00> : vector<2x64xf32>
    %19 = tpu.matmul %17, %18, %cst_14 {dimension_numbers = #tpu.dot_dimension_numbers<[1], [0], [0], [1], [0, 0, 1, 1], [], []>} : vector<2x128xbf16>, vector<128x64xbf16>, vector<2x64xf32> -> vector<2x64xf32>
    %c0_15 = arith.constant 0 : index
    %c0_16 = arith.constant 0 : index
    %20 = vector.load %arg7[%c0_15, %c0_16] : memref<1x64xf32, #tpu.memory_space<vmem>>, vector<1x64xf32>
    %21 = vector.broadcast %20 : vector<1x64xf32> to vector<2x64xf32>
    %22 = arith.addf %19, %21 : vector<2x64xf32>
    %cst_17 = arith.constant 0.000000e+00 : f32
    %23 = vector.broadcast %cst_17 : f32 to vector<2x64xf32>
    %24 = arith.maximumf %22, %23 : vector<2x64xf32>
    %25 = arith.truncf %24 : vector<2x64xf32> to vector<2x64xbf16>
    %c0_18 = arith.constant 0 : index
    %c0_19 = arith.constant 0 : index
    %26 = vector.load %arg8[%c0_18, %c0_19] : memref<64x32xbf16, #tpu.memory_space<vmem>>, vector<64x32xbf16>
    %cst_20 = arith.constant dense<0.000000e+00> : vector<2x32xf32>
    %27 = tpu.matmul %25, %26, %cst_20 {dimension_numbers = #tpu.dot_dimension_numbers<[1], [0], [0], [1], [0, 0, 1, 1], [], []>} : vector<2x64xbf16>, vector<64x32xbf16>, vector<2x32xf32> -> vector<2x32xf32>
    %c0_21 = arith.constant 0 : index
    %c0_22 = arith.constant 0 : index
    %28 = vector.load %arg9[%c0_21, %c0_22] : memref<1x32xf32, #tpu.memory_space<vmem>>, vector<1x32xf32>
    %29 = vector.broadcast %28 : vector<1x32xf32> to vector<2x32xf32>
    %30 = arith.addf %27, %29 : vector<2x32xf32>
    %cst_23 = arith.constant 0.000000e+00 : f32
    %31 = vector.broadcast %cst_23 : f32 to vector<2x32xf32>
    %32 = arith.maximumf %30, %31 : vector<2x32xf32>
    %33 = arith.truncf %32 : vector<2x32xf32> to vector<2x32xbf16>
    %c0_24 = arith.constant 0 : index
    %c0_25 = arith.constant 0 : index
    %34 = vector.load %arg10[%c0_24, %c0_25] : memref<32x9xbf16, #tpu.memory_space<vmem>>, vector<32x9xbf16>
    %cst_26 = arith.constant dense<0.000000e+00> : vector<2x9xf32>
    %35 = tpu.matmul %33, %34, %cst_26 {dimension_numbers = #tpu.dot_dimension_numbers<[1], [0], [0], [1], [0, 0, 1, 1], [], []>} : vector<2x32xbf16>, vector<32x9xbf16>, vector<2x9xf32> -> vector<2x9xf32>
    %c0_27 = arith.constant 0 : index
    %c0_28 = arith.constant 0 : index
    %36 = vector.load %arg11[%c0_27, %c0_28] : memref<1x9xf32, #tpu.memory_space<vmem>>, vector<1x9xf32>
    %37 = vector.broadcast %36 : vector<1x9xf32> to vector<2x9xf32>
    %38 = arith.addf %35, %37 : vector<2x9xf32>
    %cst_29 = arith.constant dense<0xFF800000> : vector<2xf32>
    %39 = vector.multi_reduction <maximumf>, %38, %cst_29 [1] : vector<2x9xf32> to vector<2xf32>
    %40 = vector.shape_cast %39 : vector<2xf32> to vector<2x1xf32>
    %41 = vector.broadcast %40 : vector<2x1xf32> to vector<2x9xf32>
    %42 = arith.subf %38, %41 : vector<2x9xf32>
    %43 = math.exp %42 : vector<2x9xf32>
    %cst_30 = arith.constant dense<0.000000e+00> : vector<2xf32>
    %44 = vector.multi_reduction <add>, %43, %cst_30 [1] : vector<2x9xf32> to vector<2xf32>
    %45 = vector.shape_cast %44 : vector<2xf32> to vector<2x1xf32>
    %46 = vector.broadcast %40 : vector<2x1xf32> to vector<2x9xf32>
    %47 = arith.subf %38, %46 : vector<2x9xf32>
    %48 = math.log %45 : vector<2x1xf32>
    %49 = vector.broadcast %48 : vector<2x1xf32> to vector<2x9xf32>
    %50 = arith.subf %47, %49 : vector<2x9xf32>
    %c0_31 = arith.constant 0 : index
    %c0_32 = arith.constant 0 : index
    %51 = vector.load %arg12[%c0_31, %c0_32] : memref<2x9xf32, #tpu.memory_space<vmem>>, vector<2x9xf32>
    tpu.vector_store %arg12[%c0_31, %c0_32], %50 {strides = array<i32>} : memref<2x9xf32, #tpu.memory_space<vmem>>, vector<2x9xf32>,
    return
  }
  func.func @transform_0(%arg0: i32) -> (i32, i32) {
    %c0_i32 = arith.constant 0 : i32
    %c0_i32_0 = arith.constant 0 : i32
    return %arg0, %c0_i32 : i32, i32
  }
  func.func @transform_1(%arg0: i32) -> (i32, i32) {
    %c0_i32 = arith.constant 0 : i32
    %c0_i32_0 = arith.constant 0 : i32
    %c0_i32_1 = arith.constant 0 : i32
    return %c0_i32, %c0_i32_0 : i32, i32
  }
  func.func @transform_2(%arg0: i32) -> (i32, i32) {
    %c0_i32 = arith.constant 0 : i32
    %c0_i32_0 = arith.constant 0 : i32
    %c0_i32_1 = arith.constant 0 : i32
    return %c0_i32, %c0_i32_0 : i32, i32
  }
  func.func @transform_3(%arg0: i32) -> (i32, i32) {
    %c0_i32 = arith.constant 0 : i32
    %c0_i32_0 = arith.constant 0 : i32
    %c0_i32_1 = arith.constant 0 : i32
    return %c0_i32, %c0_i32_0 : i32, i32
  }
  func.func @transform_4(%arg0: i32) -> (i32, i32) {
    %c0_i32 = arith.constant 0 : i32
    %c0_i32_0 = arith.constant 0 : i32
    %c0_i32_1 = arith.constant 0 : i32
    return %c0_i32, %c0_i32_0 : i32, i32
  }
  func.func @transform_5(%arg0: i32) -> (i32, i32) {
    %c0_i32 = arith.constant 0 : i32
    %c0_i32_0 = arith.constant 0 : i32
    %c0_i32_1 = arith.constant 0 : i32
    return %c0_i32, %c0_i32_0 : i32, i32
  }
  func.func @transform_6(%arg0: i32) -> (i32, i32) {
    %c0_i32 = arith.constant 0 : i32
    %c0_i32_0 = arith.constant 0 : i32
    %c0_i32_1 = arith.constant 0 : i32
    return %c0_i32, %c0_i32_0 : i32, i32
  }
  func.func @transform_7(%arg0: i32) -> (i32, i32) {
    %c0_i32 = arith.constant 0 : i32
    %c0_i32_0 = arith.constant 0 : i32
    %c0_i32_1 = arith.constant 0 : i32
    return %c0_i32, %c0_i32_0 : i32, i32
  }
  func.func @transform_8(%arg0: i32) -> (i32, i32) {
    %c0_i32 = arith.constant 0 : i32
    %c0_i32_0 = arith.constant 0 : i32
    %c0_i32_1 = arith.constant 0 : i32
    return %c0_i32, %c0_i32_0 : i32, i32
  }
  func.func @transform_9(%arg0: i32) -> (i32, i32) {
    %c0_i32 = arith.constant 0 : i32
    %c0_i32_0 = arith.constant 0 : i32
    %c0_i32_1 = arith.constant 0 : i32
    return %c0_i32, %c0_i32_0 : i32, i32
  }
  func.func @transform_10(%arg0: i32) -> (i32, i32) {
    %c0_i32 = arith.constant 0 : i32
    %c0_i32_0 = arith.constant 0 : i32
    %c0_i32_1 = arith.constant 0 : i32
    return %c0_i32, %c0_i32_0 : i32, i32
  }
  func.func @transform_11(%arg0: i32) -> (i32, i32) {
    %c0_i32 = arith.constant 0 : i32
    %c0_i32_0 = arith.constant 0 : i32
    return %arg0, %c0_i32 : i32, i32
  }
}

</mosaic_0001>

<llo_original>
// kernel: tictactoe_forward.1
$region0: #{tictactoe_forward.1}
  #allocation0 [shape = 'u32[]', space=smem, size = 0x4, offset = 0x4, fixed_abs, tag = 'smem constant byte address 0x4 - core index']
  #allocation1 [shape = 'u32[144,128]{1,0:T(1,128)}', space=vmem, size = 0x12000, scoped, tag = 'internal scratch']
  %s0 = inlined_call_operand.vmem [shape: f32[2,10], index: 0, kind: input, shape index: {}]
  %s1 = inlined_call_operand.vmem [shape: bf16[10,64], index: 1, kind: input, shape index: {}]
  %s2 = inlined_call_operand.vmem [shape: f32[1,64], index: 2, kind: input, shape index: {}]
  %s3 = inlined_call_operand.vmem [shape: bf16[64,128], index: 3, kind: input, shape index: {}]
  %s4 = inlined_call_operand.vmem [shape: f32[1,128], index: 4, kind: input, shape index: {}]
  %s5 = inlined_call_operand.vmem [shape: bf16[128,64], index: 5, kind: input, shape index: {}]
  %s6 = inlined_call_operand.vmem [shape: f32[1,64], index: 6, kind: input, shape index: {}]
  %s7 = inlined_call_operand.vmem [shape: bf16[64,32], index: 7, kind: input, shape index: {}]
  %s8 = inlined_call_operand.vmem [shape: f32[1,32], index: 8, kind: input, shape index: {}]
  %s9 = inlined_call_operand.vmem [shape: bf16[32,9], index: 9, kind: input, shape index: {}]
  %s10 = inlined_call_operand.vmem [shape: f32[1,9], index: 10, kind: input, shape index: {}]
  %s11 = inlined_call_operand.hbm [shape: f32[2,9], index: 11, kind: output, shape index: {}]
  %s12 = sld [smem:[#allocation0]]
  $region54: #{tictactoe_forward.1} parent=0
    _
  %s14 = ssub.s32 1, %s12
  %s15 = scalar_select 0, %s14, %s12
  $region1: #{tictactoe_forward.1} parent=0
    #allocation2 [shape = 'u8[1024]{0}', space=vmem, size = 0x400, scoped, tag = 'output window, operand 0, single buffered']
    #allocation3 [shape = 's32[1]{0}', space=sflag, size = 0x4, scoped, tag = 'scoped memory for tictactoe_forward.1']
    %16 = vsyncpa [#allocation3], 0
    // Predicated region
    $region2: #{tictactoe_forward.1} parent=1 // pred_check
      _
    $region3: #{tictactoe_forward.1} parent=1 // pred_check_branch
      %18 = sbr.rel (0) target = $region5
    $region4: #{tictactoe_forward.1} parent=1 // pred_region
      _
    $region5: #{tictactoe_forward.1} parent=1 // pred_fallthru
      _
    // Predicated region
    $region6: #{tictactoe_forward.1} parent=1 // pred_check
      _
    $region7: #{tictactoe_forward.1} parent=1 // pred_check_branch
      %20 = sbr.rel (0) target = $region9
    $region8: #{tictactoe_forward.1} parent=1 // pred_region
      _
    $region9: #{tictactoe_forward.1} parent=1 // pred_fallthru
      _
    // Predicated region
    $region10: #{tictactoe_forward.1} parent=1 // pred_check
      _
    $region11: #{tictactoe_forward.1} parent=1 // pred_check_branch
      %22 = sbr.rel (0) target = $region13
    $region12: #{tictactoe_forward.1} parent=1 // pred_region
      _
    $region13: #{tictactoe_forward.1} parent=1 // pred_fallthru
      _
    // Predicated region
    $region14: #{tictactoe_forward.1} parent=1 // pred_check
      _
    $region15: #{tictactoe_forward.1} parent=1 // pred_check_branch
      %24 = sbr.rel (0) target = $region17
    $region16: #{tictactoe_forward.1} parent=1 // pred_region
      _
    $region17: #{tictactoe_forward.1} parent=1 // pred_fallthru
      _
    // Predicated region
    $region18: #{tictactoe_forward.1} parent=1 // pred_check
      _
    $region19: #{tictactoe_forward.1} parent=1 // pred_check_branch
      %26 = sbr.rel (0) target = $region21
    $region20: #{tictactoe_forward.1} parent=1 // pred_region
      _
    $region21: #{tictactoe_forward.1} parent=1 // pred_fallthru
      _
    // Predicated region
    $region22: #{tictactoe_forward.1} parent=1 // pred_check
      _
    $region23: #{tictactoe_forward.1} parent=1 // pred_check_branch
      %28 = sbr.rel (0) target = $region25
    $region24: #{tictactoe_forward.1} parent=1 // pred_region
      _
    $region25: #{tictactoe_forward.1} parent=1 // pred_fallthru
      _
    // Predicated region
    $region26: #{tictactoe_forward.1} parent=1 // pred_check
      _
    $region27: #{tictactoe_forward.1} parent=1 // pred_check_branch
      %30 = sbr.rel (0) target = $region29
    $region28: #{tictactoe_forward.1} parent=1 // pred_region
      _
    $region29: #{tictactoe_forward.1} parent=1 // pred_fallthru
      _
    // Predicated region
    $region30: #{tictactoe_forward.1} parent=1 // pred_check
      _
    $region31: #{tictactoe_forward.1} parent=1 // pred_check_branch
      %32 = sbr.rel (0) target = $region33
    $region32: #{tictactoe_forward.1} parent=1 // pred_region
      _
    $region33: #{tictactoe_forward.1} parent=1 // pred_fallthru
      _
    // Predicated region
    $region34: #{tictactoe_forward.1} parent=1 // pred_check
      _
    $region35: #{tictactoe_forward.1} parent=1 // pred_check_branch
      %34 = sbr.rel (0) target = $region37
    $region36: #{tictactoe_forward.1} parent=1 // pred_region
      _
    $region37: #{tictactoe_forward.1} parent=1 // pred_fallthru
      _
    // Predicated region
    $region38: #{tictactoe_forward.1} parent=1 // pred_check
      _
    $region39: #{tictactoe_forward.1} parent=1 // pred_check_branch
      %36 = sbr.rel (0) target = $region41
    $region40: #{tictactoe_forward.1} parent=1 // pred_region
      _
    $region41: #{tictactoe_forward.1} parent=1 // pred_fallthru
      _
    // Predicated region
    $region42: #{tictactoe_forward.1} parent=1 // pred_check
      _
    $region43: #{tictactoe_forward.1} parent=1 // pred_check_branch
      %38 = sbr.rel (0) target = $region45
    $region44: #{tictactoe_forward.1} parent=1 // pred_region
      _
    $region45: #{tictactoe_forward.1} parent=1 // pred_fallthru
      _
    %v40 = vld [vmem:[%s0] sm:$0x3]
    %v41 = vpack.c.bf16 %v40, %v40
    %v42 = vld [vmem:[%s1] sm:$0xf]
    %v43 = vld [vmem:[%s1 + $0x4] sm:$0x1]
    %v44 = vld [vmem:[%s2] sm:$0x1]
    %v46 = vlaneseq
    %v47 = vshrl.u32 %v46, 7
    %v48 = vsub.s32 0, %v47
    %v49 = vrot.slane %v44, %v48
    %v53 = vunpack.c.l.b16 %v42
    %v54 = vunpack.c.l.b16 %v43
    %v55 = vpack.c.b16 %v54, %v53
    %vm56 = vcmask 80896
    %v58 = vsel %vm56, %v41, 0
    %vm60 = vcmask 1044480
    %v62 = vsel %vm60, %v55, 0
    %64 = vmatprep.subr.bf16.mxu0 0
    %65 = vmatpush1.bf16.msra.mxu0 0
    %66 = vmatprep.subr.bf16.mxu0 0
    %67 = vmatpush1.bf16.msra.mxu0 0
    %68 = vmatprep.subr.bf16.mxu0 0
    %69 = vmatpush1.bf16.msra.mxu0 0
    %70 = vmatprep.subr.bf16.mxu0 0
    %71 = vmatpush1.bf16.msra.mxu0 0
    %72 = vmatprep.subr.bf16.mxu0 0
    %73 = vmatpush1.bf16.msra.mxu0 0
    %74 = vmatprep.subr.bf16.mxu0 0
    %75 = vmatpush1.bf16.msra.mxu0 0
    %76 = vmatprep.subr.bf16.mxu0 0
    %77 = vmatpush1.bf16.msra.mxu0 0
    %78 = vmatprep.subr.bf16.mxu0 0
    %79 = vmatpush1.bf16.msra.mxu0 %v62
    %80 = vmatprep.subr.bf16.mxu0 0
    %81 = vmatpush2.bf16.msra.mxu0 0
    %82 = vmatprep.subr.bf16.mxu0 0
    %83 = vmatpush2.bf16.msra.mxu0 0
    %84 = vmatprep.subr.bf16.mxu0 0
    %85 = vmatpush2.bf16.msra.mxu0 0
    %86 = vmatprep.subr.bf16.mxu0 0
    %87 = vmatpush2.bf16.msra.mxu0 0
    %88 = vmatprep.subr.bf16.mxu0 0
    %89 = vmatpush2.bf16.msra.mxu0 0
    %90 = vmatprep.subr.bf16.mxu0 0
    %91 = vmatpush2.bf16.msra.mxu0 0
    %92 = vmatprep.subr.bf16.mxu0 0
    %93 = vmatpush2.bf16.msra.mxu0 0
    %94 = vmatprep.subr.bf16.mxu0 0
    %95 = vmatpush2.bf16.msra.mxu0 0
    %96 = vmatprep.mubr.bf16.mxu0 0
    %97 = vmatmul.mubr.bf16.gmra.mxu0 %v58
    %v98 = vpop.f32.mrf.mxu0
    %v99 = vadd.f32 %v49, %v98
    %v100 = vpop.f32.mrf.mxu0
    %v101 = vpop.f32.mrf.mxu0
    %v102 = vpop.f32.mrf.mxu0
    %103 = vdwg.mxu0
    %v104 = vmax.f32 %v99, 0.0
    %v105 = vpack.c.bf16 %v104, %v104
    %v106 = vld [vmem:[%s3] sm:$0xf]
    %v107 = vld [vmem:[%s3 + $0x4] sm:$0xf]
    %v108 = vld [vmem:[%s3 + $0x8] sm:$0xf]
    %v109 = vld [vmem:[%s3 + $0xc] sm:$0xf]
    %v110 = vld [vmem:[%s3 + $0x10] sm:$0xf]
    %v111 = vld [vmem:[%s3 + $0x14] sm:$0xf]
    %v112 = vld [vmem:[%s3 + $0x18] sm:$0xf]
    %v113 = vld [vmem:[%s3 + $0x1c] sm:$0xf]
    %v114 = vld [vmem:[%s4] sm:$0x1]
    %v116 = vlaneseq
    %v117 = vshrl.u32 %v116, 7
    %v118 = vsub.s32 0, %v117
    %v119 = vrot.slane %v114, %v118
    %v129 = vunpack.c.l.b16 %v106
    %v130 = vunpack.c.l.b16 %v107
    %v131 = vunpack.c.l.b16 %v108
    %v132 = vunpack.c.l.b16 %v109
    %v133 = vunpack.c.l.b16 %v110
    %v134 = vunpack.c.l.b16 %v111
    %v135 = vunpack.c.l.b16 %v112
    %v136 = vunpack.c.l.b16 %v113
    %v137 = vpack.c.b16 %v130, %v129
    %v138 = vpack.c.b16 %v132, %v131
    %v139 = vpack.c.b16 %v134, %v133
    %v140 = vpack.c.b16 %v136, %v135
    %vm145 = vcmask 523264
    %v147 = vsel %vm145, %v105, 0
    %149 = vmatprep.subr.bf16.mxu0 0
    %150 = vmatpush1.bf16.msra.mxu0 0
    %151 = vmatprep.subr.bf16.mxu0 0
    %152 = vmatpush1.bf16.msra.mxu0 0
    %153 = vmatprep.subr.bf16.mxu0 0
    %154 = vmatpush1.bf16.msra.mxu0 0
    %155 = vmatprep.subr.bf16.mxu0 0
    %156 = vmatpush1.bf16.msra.mxu0 0
    %157 = vmatprep.subr.bf16.mxu0 0
    %158 = vmatpush1.bf16.msra.mxu0 %v140
    %159 = vmatprep.subr.bf16.mxu0 0
    %160 = vmatpush1.bf16.msra.mxu0 %v139
    %161 = vmatprep.subr.bf16.mxu0 0
    %162 = vmatpush1.bf16.msra.mxu0 %v138
    %163 = vmatprep.subr.bf16.mxu0 0
    %164 = vmatpush1.bf16.msra.mxu0 %v137
    %165 = vmatprep.subr.bf16.mxu0 0
    %166 = vmatpush2.bf16.msra.mxu0 0
    %167 = vmatprep.subr.bf16.mxu0 0
    %168 = vmatpush2.bf16.msra.mxu0 0
    %169 = vmatprep.subr.bf16.mxu0 0
    %170 = vmatpush2.bf16.msra.mxu0 0
    %171 = vmatprep.subr.bf16.mxu0 0
    %172 = vmatpush2.bf16.msra.mxu0 0
    %173 = vmatprep.subr.bf16.mxu0 0
    %174 = vmatpush2.bf16.msra.mxu0 0
    %175 = vmatprep.subr.bf16.mxu0 0
    %176 = vmatpush2.bf16.msra.mxu0 0
    %177 = vmatprep.subr.bf16.mxu0 0
    %178 = vmatpush2.bf16.msra.mxu0 0
    %179 = vmatprep.subr.bf16.mxu0 0
    %180 = vmatpush2.bf16.msra.mxu0 0
    %181 = vmatprep.mubr.bf16.mxu0 0
    %182 = vmatmul.mubr.bf16.gmra.mxu0 %v147
    %v183 = vpop.f32.mrf.mxu0
    %v184 = vadd.f32 %v119, %v183
    %v185 = vpop.f32.mrf.mxu0
    %v186 = vpop.f32.mrf.mxu0
    %v187 = vpop.f32.mrf.mxu0
    %188 = vdwg.mxu0
    %v189 = vmax.f32 %v184, 0.0
    %v190 = vpack.c.bf16 %v189, %v189
    %v191 = vld [vmem:[%s5] sm:$0xf]
    %v192 = vld [vmem:[%s5 + $0x4] sm:$0xf]
    %v193 = vld [vmem:[%s5 + $0x8] sm:$0xf]
    %v194 = vld [vmem:[%s5 + $0xc] sm:$0xf]
    %v195 = vld [vmem:[%s5 + $0x10] sm:$0xf]
    %v196 = vld [vmem:[%s5 + $0x14] sm:$0xf]
    %v197 = vld [vmem:[%s5 + $0x18] sm:$0xf]
    %v198 = vld [vmem:[%s5 + $0x1c] sm:$0xf]
    %v199 = vld [vmem:[%s5 + $0x20] sm:$0xf]
    %v200 = vld [vmem:[%s5 + $0x24] sm:$0xf]
    %v201 = vld [vmem:[%s5 + $0x28] sm:$0xf]
    %v202 = vld [vmem:[%s5 + $0x2c] sm:$0xf]
    %v203 = vld [vmem:[%s5 + $0x30] sm:$0xf]
    %v204 = vld [vmem:[%s5 + $0x34] sm:$0xf]
    %v205 = vld [vmem:[%s5 + $0x38] sm:$0xf]
    %v206 = vld [vmem:[%s5 + $0x3c] sm:$0xf]
    %v207 = vld [vmem:[%s6] sm:$0x1]
    %v209 = vlaneseq
    %v210 = vshrl.u32 %v209, 7
    %v211 = vsub.s32 0, %v210
    %v212 = vrot.slane %v207, %v211
    %v230 = vunpack.c.l.b16 %v191
    %v231 = vunpack.c.l.b16 %v192
    %v232 = vunpack.c.l.b16 %v193
    %v233 = vunpack.c.l.b16 %v194
    %v234 = vunpack.c.l.b16 %v195
    %v235 = vunpack.c.l.b16 %v196
    %v236 = vunpack.c.l.b16 %v197
    %v237 = vunpack.c.l.b16 %v198
    %v238 = vunpack.c.l.b16 %v199
    %v239 = vunpack.c.l.b16 %v200
    %v240 = vunpack.c.l.b16 %v201
    %v241 = vunpack.c.l.b16 %v202
    %v242 = vunpack.c.l.b16 %v203
    %v243 = vunpack.c.l.b16 %v204
    %v244 = vunpack.c.l.b16 %v205
    %v245 = vunpack.c.l.b16 %v206
    %v246 = vpack.c.b16 %v231, %v230
    %v247 = vpack.c.b16 %v233, %v232
    %v248 = vpack.c.b16 %v235, %v234
    %v249 = vpack.c.b16 %v237, %v236
    %v250 = vpack.c.b16 %v239, %v238
    %v251 = vpack.c.b16 %v241, %v240
    %v252 = vpack.c.b16 %v243, %v242
    %v253 = vpack.c.b16 %v245, %v244
    %262 = vmatprep.subr.bf16.mxu0 0
    %263 = vmatpush1.bf16.msra.mxu0 %v253
    %264 = vmatprep.subr.bf16.mxu0 0
    %265 = vmatpush1.bf16.msra.mxu0 %v252
    %266 = vmatprep.subr.bf16.mxu0 0
    %267 = vmatpush1.bf16.msra.mxu0 %v251
    %268 = vmatprep.subr.bf16.mxu0 0
    %269 = vmatpush1.bf16.msra.mxu0 %v250
    %270 = vmatprep.subr.bf16.mxu0 0
    %271 = vmatpush1.bf16.msra.mxu0 %v249
    %272 = vmatprep.subr.bf16.mxu0 0
    %273 = vmatpush1.bf16.msra.mxu0 %v248
    %274 = vmatprep.subr.bf16.mxu0 0
    %275 = vmatpush1.bf16.msra.mxu0 %v247
    %276 = vmatprep.subr.bf16.mxu0 0
    %277 = vmatpush1.bf16.msra.mxu0 %v246
    %278 = vmatprep.subr.bf16.mxu0 0
    %279 = vmatpush2.bf16.msra.mxu0 0
    %280 = vmatprep.subr.bf16.mxu0 0
    %281 = vmatpush2.bf16.msra.mxu0 0
    %282 = vmatprep.subr.bf16.mxu0 0
    %283 = vmatpush2.bf16.msra.mxu0 0
    %284 = vmatprep.subr.bf16.mxu0 0
    %285 = vmatpush2.bf16.msra.mxu0 0
    %286 = vmatprep.subr.bf16.mxu0 0
    %287 = vmatpush2.bf16.msra.mxu0 0
    %288 = vmatprep.subr.bf16.mxu0 0
    %289 = vmatpush2.bf16.msra.mxu0 0
    %290 = vmatprep.subr.bf16.mxu0 0
    %291 = vmatpush2.bf16.msra.mxu0 0
    %292 = vmatprep.subr.bf16.mxu0 0
    %293 = vmatpush2.bf16.msra.mxu0 0
    %294 = vmatprep.mubr.bf16.mxu0 0
    %295 = vmatmul.mubr.bf16.gmra.mxu0 %v190
    %v296 = vpop.f32.mrf.mxu0
    %v297 = vadd.f32 %v212, %v296
    %v298 = vpop.f32.mrf.mxu0
    %v299 = vpop.f32.mrf.mxu0
    %v300 = vpop.f32.mrf.mxu0
    %301 = vdwg.mxu0
    %v302 = vmax.f32 %v297, 0.0
    %v303 = vpack.c.bf16 %v302, %v302
    %v304 = vld [vmem:[%s7] sm:$0xf]
    %v305 = vld [vmem:[%s7 + $0x4] sm:$0xf]
    %v306 = vld [vmem:[%s7 + $0x8] sm:$0xf]
    %v307 = vld [vmem:[%s7 + $0xc] sm:$0xf]
    %v308 = vld [vmem:[%s7 + $0x10] sm:$0xf]
    %v309 = vld [vmem:[%s7 + $0x14] sm:$0xf]
    %v310 = vld [vmem:[%s7 + $0x18] sm:$0xf]
    %v311 = vld [vmem:[%s7 + $0x1c] sm:$0xf]
    %v312 = vld [vmem:[%s8] sm:$0x1]
    %v314 = vlaneseq
    %v315 = vshrl.u32 %v314, 7
    %v316 = vsub.s32 0, %v315
    %v317 = vrot.slane %v312, %v316
    %v327 = vunpack.c.l.b16 %v304
    %v328 = vunpack.c.l.b16 %v305
    %v329 = vunpack.c.l.b16 %v306
    %v330 = vunpack.c.l.b16 %v307
    %v331 = vunpack.c.l.b16 %v308
    %v332 = vunpack.c.l.b16 %v309
    %v333 = vunpack.c.l.b16 %v310
    %v334 = vunpack.c.l.b16 %v311
    %v335 = vpack.c.b16 %v328, %v327
    %v336 = vpack.c.b16 %v330, %v329
    %v337 = vpack.c.b16 %v332, %v331
    %v338 = vpack.c.b16 %v334, %v333
    %v344 = vsel %vm145, %v303, 0
    %346 = vmatprep.subr.bf16.mxu0 0
    %347 = vmatpush1.bf16.msra.mxu0 0
    %348 = vmatprep.subr.bf16.mxu0 0
    %349 = vmatpush1.bf16.msra.mxu0 0
    %350 = vmatprep.subr.bf16.mxu0 0
    %351 = vmatpush1.bf16.msra.mxu0 0
    %352 = vmatprep.subr.bf16.mxu0 0
    %353 = vmatpush1.bf16.msra.mxu0 0
    %354 = vmatprep.subr.bf16.mxu0 0
    %355 = vmatpush1.bf16.msra.mxu0 %v338
    %356 = vmatprep.subr.bf16.mxu0 0
    %357 = vmatpush1.bf16.msra.mxu0 %v337
    %358 = vmatprep.subr.bf16.mxu0 0
    %359 = vmatpush1.bf16.msra.mxu0 %v336
    %360 = vmatprep.subr.bf16.mxu0 0
    %361 = vmatpush1.bf16.msra.mxu0 %v335
    %362 = vmatprep.subr.bf16.mxu0 0
    %363 = vmatpush2.bf16.msra.mxu0 0
    %364 = vmatprep.subr.bf16.mxu0 0
    %365 = vmatpush2.bf16.msra.mxu0 0
    %366 = vmatprep.subr.bf16.mxu0 0
    %367 = vmatpush2.bf16.msra.mxu0 0
    %368 = vmatprep.subr.bf16.mxu0 0
    %369 = vmatpush2.bf16.msra.mxu0 0
    %370 = vmatprep.subr.bf16.mxu0 0
    %371 = vmatpush2.bf16.msra.mxu0 0
    %372 = vmatprep.subr.bf16.mxu0 0
    %373 = vmatpush2.bf16.msra.mxu0 0
    %374 = vmatprep.subr.bf16.mxu0 0
    %375 = vmatpush2.bf16.msra.mxu0 0
    %376 = vmatprep.subr.bf16.mxu0 0
    %377 = vmatpush2.bf16.msra.mxu0 0
    %378 = vmatprep.mubr.bf16.mxu0 0
    %379 = vmatmul.mubr.bf16.gmra.mxu0 %v344
    %v380 = vpop.f32.mrf.mxu0
    %v381 = vadd.f32 %v317, %v380
    %v382 = vpop.f32.mrf.mxu0
    %v383 = vpop.f32.mrf.mxu0
    %v384 = vpop.f32.mrf.mxu0
    %385 = vdwg.mxu0
    %v386 = vmax.f32 %v381, 0.0
    %v387 = vpack.c.bf16 %v386, %v386
    %v388 = vld [vmem:[%s9] sm:$0xf]
    %v389 = vld [vmem:[%s9 + $0x4] sm:$0xf]
    %v390 = vld [vmem:[%s9 + $0x8] sm:$0xf]
    %v391 = vld [vmem:[%s9 + $0xc] sm:$0xf]
    %v392 = vld [vmem:[%s10] sm:$0x1]
    %v394 = vlaneseq
    %v395 = vshrl.u32 %v394, 7
    %v396 = vsub.s32 0, %v395
    %v397 = vrot.slane %v392, %v396
    %v403 = vunpack.c.l.b16 %v388
    %v404 = vunpack.c.l.b16 %v389
    %v405 = vunpack.c.l.b16 %v390
    %v406 = vunpack.c.l.b16 %v391
    %v407 = vpack.c.b16 %v404, %v403
    %v408 = vpack.c.b16 %v406, %v405
    %vm411 = vcmask 261120
    %v413 = vsel %vm411, %v387, 0
    %415 = vmatprep.subr.bf16.mxu0 0
    %416 = vmatpush1.bf16.msra.mxu0 0
    %417 = vmatprep.subr.bf16.mxu0 0
    %418 = vmatpush1.bf16.msra.mxu0 0
    %419 = vmatprep.subr.bf16.mxu0 0
    %420 = vmatpush1.bf16.msra.mxu0 0
    %421 = vmatprep.subr.bf16.mxu0 0
    %422 = vmatpush1.bf16.msra.mxu0 0
    %423 = vmatprep.subr.bf16.mxu0 0
    %424 = vmatpush1.bf16.msra.mxu0 0
    %425 = vmatprep.subr.bf16.mxu0 0
    %426 = vmatpush1.bf16.msra.mxu0 0
    %427 = vmatprep.subr.bf16.mxu0 0
    %428 = vmatpush1.bf16.msra.mxu0 %v408
    %429 = vmatprep.subr.bf16.mxu0 0
    %430 = vmatpush1.bf16.msra.mxu0 %v407
    %431 = vmatprep.subr.bf16.mxu0 0
    %432 = vmatpush2.bf16.msra.mxu0 0
    %433 = vmatprep.subr.bf16.mxu0 0
    %434 = vmatpush2.bf16.msra.mxu0 0
    %435 = vmatprep.subr.bf16.mxu0 0
    %436 = vmatpush2.bf16.msra.mxu0 0
    %437 = vmatprep.subr.bf16.mxu0 0
    %438 = vmatpush2.bf16.msra.mxu0 0
    %439 = vmatprep.subr.bf16.mxu0 0
    %440 = vmatpush2.bf16.msra.mxu0 0
    %441 = vmatprep.subr.bf16.mxu0 0
    %442 = vmatpush2.bf16.msra.mxu0 0
    %443 = vmatprep.subr.bf16.mxu0 0
    %444 = vmatpush2.bf16.msra.mxu0 0
    %445 = vmatprep.subr.bf16.mxu0 0
    %446 = vmatpush2.bf16.msra.mxu0 0
    %447 = vmatprep.mubr.bf16.mxu0 0
    %448 = vmatmul.mubr.bf16.gmra.mxu0 %v413
    %v449 = vpop.f32.mrf.mxu0
    %v450 = vadd.f32 %v397, %v449
    %v451 = vpop.f32.mrf.mxu0
    %v452 = vpop.f32.mrf.mxu0
    %v453 = vpop.f32.mrf.mxu0
    %454 = vdwg.mxu0
    %vm455 = vcmask 66560
    %v456 = vsel %vm455, %v450, -inf
    %457 = vmax.xlane.f32.xlu0 %v456
    %v458 = vpop.xlane.xlu0 %457
    %v459 = vsub.f32 %v450, %v458
    %v460 = vmul.f32 %v459, 1.442695
    %v461 = vpow.pop %v460
    %v462 = vsel %vm455, %v461, 0.0
    %463 = vadd.xlane.f32.xlu0 %v462
    %v464 = vpop.xlane.xlu0 %463
    %v465 = vlog2.pop %v464
    %v466 = vmul.f32 %v465, 0.6931472
    %v467 = vsub.f32 %v459, %v466
    %468 = vst.msk [vmem:[#allocation2] sm:$0x3] %vm455, %v467
    // Predicated region
    $region46: #{tictactoe_forward.1} parent=1 // pred_check
      _
    $region47: #{tictactoe_forward.1} parent=1 // pred_check_branch
      %470 = sbr.rel (0) target = $region49
    $region48: #{tictactoe_forward.1} parent=1 // pred_region
      %s472 = ssub.s32 32, 32
      %473 = vsyncadd [#allocation3], %s472
      %s475 = sshll.u32 [#allocation2], 4
      %s476 = int_to_ptr.vmem [resolvable:$true] %s475
      %478 = dma.vmem_to_hbm [thread:$0]  %s476, 32, %s11, [#allocation3]
    $region49: #{tictactoe_forward.1} parent=1 // pred_fallthru
      _
    // Predicated region
    $region50: #{tictactoe_forward.1} parent=1 // pred_check
      _
    $region51: #{tictactoe_forward.1} parent=1 // pred_check_branch
      %480 = sbr.rel (0) target = $region53
    $region52: #{tictactoe_forward.1} parent=1 // pred_region
      %481 = dma.done [#allocation3], 32
    $region53: #{tictactoe_forward.1} parent=1 // pred_fallthru
      _
    %482 = vsyncpa [#allocation3], 1

</llo_original>
